<compile_context>
chip_gen: v7x
topology: tpu7x:2x2x1
jax: 0.10.0
libtpu: 0.0.40
codegen_flags: <defaults>
</compile_context>

<pallas_src>
import math

import jax
import jax.numpy as jnp
from jax import lax
from jax.experimental import pallas as pl
from jax.experimental.pallas import tpu as pltpu

RELATION_KEYS = ("lr", "mr", "cr")
BRANCHES = ("visual", "spatial")


def _pad_to_lane(n, lane=128):
    return max(lane, pl.cdiv(n, lane) * lane)


# ----------------------------------------------------------------------------
# Fused Pallas kernel (both branches, all six heads, combine step)
# ----------------------------------------------------------------------------
def _make_fused_ican_kernel(n_layers, head_outs, out_width):
    o_lr, o_mr, o_cr = head_outs
    o_tot = o_lr + o_mr + o_cr

    def kernel(x_ref, *refs):
        w_refs = refs[:n_layers]
        o_ref = refs[n_layers]

        # ---- fused MLP: 2 MXU matmuls cover both branches x all 3 heads ----
        h = x_ref[...]
        for l in range(n_layers):
            w = w_refs[l][...]
            h = jnp.dot(h.astype(w.dtype), w, preferred_element_type=jnp.float32)
            if l < n_layers - 1:
                h = jnp.maximum(h, 0.0)  # ReLU (also keeps the bias lane at 1)

        # h: [TB, out_width]; lanes [0,o_tot)=visual heads, [o_tot,2*o_tot)=spatial.
        lane = lax.broadcasted_iota(jnp.int32, h.shape, 1)
        in_branch = jnp.where(lane < o_tot, lane, lane - o_tot)
        valid = lane < 2 * o_tot
        is_cr = valid & (in_branch >= o_lr + o_mr)
        v_cr = is_cr & (lane < o_tot)
        s_cr = is_cr & (lane >= o_tot)

        # Sigmoid heads: single, numerically stable EUP op (tanh form).
        sig = 0.5 * (jnp.tanh(0.5 * h) + 1.0)

        # Per-branch masked softmax over the 'cr' lanes (exact denominators).
        neg_inf = jnp.float32(-jnp.inf)
        m_v = jnp.max(jnp.where(v_cr, h, neg_inf), axis=1, keepdims=True)
        m_s = jnp.max(jnp.where(s_cr, h, neg_inf), axis=1, keepdims=True)
        m = jnp.where(lane < o_tot, m_v, m_s)
        e = jnp.where(is_cr, jnp.exp(h - m), 0.0)
        d_v = jnp.sum(jnp.where(v_cr, e, 0.0), axis=1, keepdims=True)
        d_s = jnp.sum(jnp.where(s_cr, e, 0.0), axis=1, keepdims=True)
        soft = e / jnp.where(lane < o_tot, d_v, d_s)

        act = jnp.where(is_cr, soft, jnp.where(valid, sig, 0.0))

        # Combined stream: align the spatial block onto lanes [0,o_tot) with a
        # lane rotation, elementwise multiply, renormalize the 'cr' lanes, and
        # rotate the result into output lanes [2*o_tot, 3*o_tot).
        s_aligned = jnp.roll(act, -o_tot, axis=1)
        prod = act * s_aligned                       # lanes [0,o_tot) = v * s
        cr0 = (lane >= o_lr + o_mr) & (lane < o_tot)
        csum = jnp.sum(jnp.where(cr0, prod, 0.0), axis=1, keepdims=True)
        comb = jnp.where(cr0, prod / csum, prod)     # exact renormalization
        comb_shifted = jnp.roll(comb, 2 * o_tot, axis=1)

        # Single lane-dense [TB, 128] store: visual | spatial | combined | 0.
        o_ref[...] = jnp.where(valid, act,
                               jnp.where(lane < 3 * o_tot, comb_shifted, 0.0))

    return kernel


# ----------------------------------------------------------------------------
# One-time parameter packing (cross-branch + cross-head, bias lane folded)
# ----------------------------------------------------------------------------
def pack_fused_params(params, relation_keys=RELATION_KEYS, out_width=128,
                      param_dtype=jnp.float32):
    """Packs all 6 heads (2 branches x 3 keys) into one block-diagonal weight
    matrix per layer.  Biases live on a constant-1 input lane which each hidden
    layer re-emits (zero weight column + bias 1, preserved by ReLU)."""
    blocks = [(b, k) for b in BRANCHES for k in relation_keys]
    n_layers = len(params[BRANCHES[0]][relation_keys[0]][0])
    for b, k in blocks:
        assert len(params[b][k][0]) == n_layers, "all heads must share depth"

    head_outs_v = tuple(params["visual"][k][0][-1].shape[1] for k in relation_keys)
    head_outs_s = tuple(params["spatial"][k][0][-1].shape[1] for k in relation_keys)
    assert head_outs_v == head_outs_s, "combined product needs matching head widths"
    assert 3 * sum(head_outs_v) <= out_width

    dv = params["visual"][relation_keys[0]][0][0].shape[0]
    ds = params["spatial"][relation_keys[0]][0][0].shape[0]
    in_off = {("visual", k): 0 for k in relation_keys}
    in_off.update({("spatial", k): dv for k in relation_keys})
    bias_row = dv + ds
    in_cols = _pad_to_lane(dv + ds + 1)

    packed = []
    for l in range(n_layers):
        last = l == n_layers - 1
        out_valid = sum(params[b][k][0][l].shape[1] for (b, k) in blocks)
        out_cols = out_width if last else _pad_to_lane(out_valid + 1)
        mat = jnp.zeros((in_cols, out_cols), dtype=jnp.float32)
        col = 0
        new_in_off = {}
        for (b, k) in blocks:
            w = jnp.asarray(params[b][k][0][l], dtype=jnp.float32)
            bias = jnp.asarray(params[b][k][1][l], dtype=jnp.float32)
            r0 = in_off[(b, k)]
            mat = mat.at[r0:r0 + w.shape[0], col:col + w.shape[1]].set(w)
            mat = mat.at[bias_row, col:col + w.shape[1]].set(bias)
            new_in_off[(b, k)] = col
            col += w.shape[1]
        if not last:
            mat = mat.at[bias_row, out_valid].set(1.0)   # carry the "1" lane forward
        packed.append(mat.astype(param_dtype))
        in_off, bias_row, in_cols = new_in_off, out_valid, out_cols
    return packed, (dv, ds), head_outs_v


# ----------------------------------------------------------------------------
# Forward wrapper: one pallas_call, batch-gridded, slab sliced back into dicts
# ----------------------------------------------------------------------------
def ican_forward(visual_feat, spatial_feat, packed_ws, head_outs,
                 out_width=128, batch_tile=512):
    B, dv = visual_feat.shape
    ds = spatial_feat.shape[1]
    in_width = packed_ws[0].shape[0]
    n_layers = len(packed_ws)
    o_lr, o_mr, o_cr = head_outs
    o_tot = o_lr + o_mr + o_cr

    # Lane-dense augmented input slab: [visual | spatial | 1 | 0-pad].
    # (Ideally this concat lives inside the upstream branch kernels; done here
    #  once per call since the branches are not part of this module's source.)
    x = jnp.zeros((B, in_width), jnp.float32)
    x = x.at[:, :dv].set(visual_feat.astype(jnp.float32))
    x = x.at[:, dv:dv + ds].set(spatial_feat.astype(jnp.float32))
    x = x.at[:, dv + ds].set(1.0)

    # Batch grid: bounded VMEM tiles (sized well under v7x's 64 MiB), weights
    # replicated across steps, batch axis sharded across TensorCores.
    tb = B if B <= batch_tile else batch_tile
    grid = (pl.cdiv(B, tb),)
    in_specs = [pl.BlockSpec((tb, in_width), lambda i: (i, 0))]
    in_specs += [pl.BlockSpec(w.shape, lambda i: (0, 0)) for w in packed_ws]
    out_specs = pl.BlockSpec((tb, out_width), lambda i: (i, 0))

    w_itemsize = jnp.dtype(packed_ws[0].dtype).itemsize
    cost = pl.CostEstimate(
        flops=2 * B * sum(w.shape[0] * w.shape[1] for w in packed_ws),
        transcendentals=2 * B * out_width,
        bytes_accessed=int(x.size * 4 + B * out_width * 4
                           + sum(w.size for w in packed_ws) * w_itemsize),
    )

    kernel = _make_fused_ican_kernel(n_layers, head_outs, out_width)
    slab = pl.pallas_call(
        kernel,
        out_shape=jax.ShapeDtypeStruct((B, out_width), jnp.float32),
        grid_spec=pltpu.PrefetchScalarGridSpec(
            num_scalar_prefetch=0, grid=grid,
            in_specs=in_specs, out_specs=out_specs),
        compiler_params=pltpu.CompilerParams(
            dimension_semantics=("parallel",)),
        cost_estimate=cost,
    )(x, *packed_ws)

    def split(base):
        return {
            "lr": slab[:, base:base + o_lr],
            "mr": slab[:, base + o_lr:base + o_lr + o_mr],
            "cr": slab[:, base + o_lr + o_mr:base + o_tot],
        }

    return {"visual": split(0), "spatial": split(o_tot), "combined": split(2 * o_tot)}


# ----------------------------------------------------------------------------
# Parameter init (deterministic, PyTorch nn.Linear-style uniform init)
# ----------------------------------------------------------------------------
def init_classifier_params(key, dims):
    weights, biases = [], []
    for i in range(len(dims) - 1):
        fan_in, fan_out = dims[i], dims[i + 1]
        bound = 1.0 / math.sqrt(fan_in)
        key, kw, kb = jax.random.split(key, 3)
        weights.append(jax.random.uniform(kw, (fan_in, fan_out),
                                          minval=-bound, maxval=bound,
                                          dtype=jnp.float32))
        biases.append(jax.random.uniform(kb, (fan_out,),
                                         minval=-bound, maxval=bound,
                                         dtype=jnp.float32))
    return key, weights, biases


# ----------------------------------------------------------------------------
# Pure-JAX reference (mirrors the torch module's math exactly)
# ----------------------------------------------------------------------------
def _classifier_ref(x, weights, biases, final_act):
    h = x
    for i, (w, b) in enumerate(zip(weights, biases)):
        h = h @ w + b
        if i < len(weights) - 1:
            h = jnp.maximum(h, 0.0)
    if final_act == "sigmoid":
        return jax.nn.sigmoid(h)
    return jax.nn.softmax(h, axis=1)


def ican_reference(visual_feat, spatial_feat, params):
    rv, rs = {}, {}
    for k in RELATION_KEYS:
        act = "softmax" if k == "cr" else "sigmoid"
        vw, vb = params["visual"][k]
        sw, sb = params["spatial"][k]
        rv[k] = _classifier_ref(visual_feat, vw, vb, act)
        rs[k] = _classifier_ref(spatial_feat, sw, sb, act)
    rc = {k: rv[k] * rs[k] for k in ["lr", "mr"]}
    cr = rv["cr"] * rs["cr"]
    rc["cr"] = cr / jnp.sum(cr, axis=1, keepdims=True)
    return {"visual": rv, "spatial": rs, "combined": rc}


if __name__ == "__main__":
    B = 8
    config = {
        "visual_branch_lr_classifier_dimension": [32, 32, 16],
        "visual_branch_mr_classifier_dimension": [32, 32, 16],
        "visual_branch_cr_classifier_dimension": [32, 32, 8],
        "spatial_branch_lr_classifier_dimension": [32, 32, 16],
        "spatial_branch_mr_classifier_dimension": [32, 32, 16],
        "spatial_branch_cr_classifier_dimension": [32, 32, 8],
    }

    key = jax.random.PRNGKey(0)
    params = {"visual": {}, "spatial": {}}
    for branch in BRANCHES:
        for k in RELATION_KEYS:
            dims = config[f"{branch}_branch_{k}_classifier_dimension"]
            key, w, b = init_classifier_params(key, dims)
            params[branch][k] = (w, b)

    # One-time packing (keep these arrays resident / donated across calls).
    # TODO(synk): set param_dtype=jnp.bfloat16 on v6e/v7x to halve weight DMA
    # bytes; kept f32 here so the check against the f32 reference stays tight.
    packed_ws, (dv, ds), head_outs = pack_fused_params(params)

    key, kv, ks = jax.random.split(key, 3)
    visual_feat = jax.random.normal(kv, (B, 32), dtype=jnp.float32)
    spatial_feat = jax.random.normal(ks, (B, 32), dtype=jnp.float32)

    out = ican_forward(visual_feat, spatial_feat, packed_ws, head_outs)
    out = jax.block_until_ready(out)

    # Correctness vs the pure-JAX reference (exact activations now; residual
    # slack only covers MXU default-precision f32 matmul vs the XLA dot).
    ref = ican_reference(visual_feat, spatial_feat, params)
    for stream in ("visual", "spatial", "combined"):
        for k in RELATION_KEYS:
            assert out[stream][k].shape == ref[stream][k].shape, (stream, k)
            assert bool(jnp.all(jnp.isfinite(out[stream][k]))), (stream, k)
            assert jnp.allclose(out[stream][k], ref[stream][k],
                                atol=2e-3, rtol=2e-3), (stream, k)

    # Combined-'cr' renormalization is exact -> rows sum to 1 tightly.
    cr_sums = jnp.sum(out["combined"]["cr"], axis=1)
    assert jnp.allclose(cr_sums, jnp.ones_like(cr_sums), atol=1e-5)

    print("KERNEL_OK")
</pallas_src>

<mosaic_0001>
module attributes {stable_mosaic.version = 11 : i64} {
  func.func @kernel(%arg0: i32, %arg1: memref<8x128xf32, #tpu.memory_space<vmem>>, %arg2: memref<128x256xf32, #tpu.memory_space<vmem>>, %arg3: memref<256x128xf32, #tpu.memory_space<vmem>>, %arg4: memref<8x128xf32, #tpu.memory_space<vmem>>) attributes {dimension_semantics = [#tpu.dimension_semantics<parallel>], iteration_bounds = array<i64: 1>, scalar_prefetch = 0 : i64, scratch_operands = 0 : i64, tpu.core_type = #tpu.core_type<tc>, window_params = [{transform_indices = @transform_0, window_bounds = array<i64: 8, 128>}, {pipeline_mode = #tpu.pipeline_mode<synchronous>, transform_indices = @transform_1, window_bounds = array<i64: 128, 256>}, {pipeline_mode = #tpu.pipeline_mode<synchronous>, transform_indices = @transform_2, window_bounds = array<i64: 256, 128>}, {transform_indices = @transform_3, window_bounds = array<i64: 8, 128>}]} {
    %c0 = arith.constant 0 : index
    %c0_0 = arith.constant 0 : index
    %0 = vector.load %arg1[%c0, %c0_0] : memref<8x128xf32, #tpu.memory_space<vmem>>, vector<8x128xf32>
    %c0_1 = arith.constant 0 : index
    %c0_2 = arith.constant 0 : index
    %1 = vector.load %arg2[%c0_1, %c0_2] : memref<128x256xf32, #tpu.memory_space<vmem>>, vector<128x256xf32>
    %cst = arith.constant dense<0.000000e+00> : vector<8x256xf32>
    %2 = tpu.matmul %0, %1, %cst {dimension_numbers = #tpu.dot_dimension_numbers<[1], [0], [0], [1], [0, 0, 1, 1], [], []>} : vector<8x128xf32>, vector<128x256xf32>, vector<8x256xf32> -> vector<8x256xf32>
    %cst_3 = arith.constant 0.000000e+00 : f32
    %3 = vector.broadcast %cst_3 : f32 to vector<8x256xf32>
    %4 = arith.maximumf %2, %3 : vector<8x256xf32>
    %c0_4 = arith.constant 0 : index
    %c0_5 = arith.constant 0 : index
    %5 = vector.load %arg3[%c0_4, %c0_5] : memref<256x128xf32, #tpu.memory_space<vmem>>, vector<256x128xf32>
    %cst_6 = arith.constant dense<0.000000e+00> : vector<8x128xf32>
    %6 = tpu.matmul %4, %5, %cst_6 {dimension_numbers = #tpu.dot_dimension_numbers<[1], [0], [0], [1], [0, 0, 1, 1], [], []>} : vector<8x256xf32>, vector<256x128xf32>, vector<8x128xf32> -> vector<8x128xf32>
    %7 = tpu.iota {dimensions = array<i32: 1>} : vector<8x128xi32>
    %c40_i32 = arith.constant 40 : i32
    %8 = vector.broadcast %c40_i32 : i32 to vector<8x128xi32>
    %9 = arith.cmpi slt, %7, %8 : vector<8x128xi32>
    %c40_i32_7 = arith.constant 40 : i32
    %10 = vector.broadcast %c40_i32_7 : i32 to vector<8x128xi32>
    %11 = arith.subi %7, %10 : vector<8x128xi32>
    %12 = arith.select %9, %7, %11 : vector<8x128xi1>, vector<8x128xi32>
    %c80_i32 = arith.constant 80 : i32
    %13 = vector.broadcast %c80_i32 : i32 to vector<8x128xi32>
    %14 = arith.cmpi slt, %7, %13 : vector<8x128xi32>
    %c32_i32 = arith.constant 32 : i32
    %15 = vector.broadcast %c32_i32 : i32 to vector<8x128xi32>
    %16 = arith.cmpi sge, %12, %15 : vector<8x128xi32>
    %17 = arith.andi %14, %16 : vector<8x128xi1>
    %c40_i32_8 = arith.constant 40 : i32
    %18 = vector.broadcast %c40_i32_8 : i32 to vector<8x128xi32>
    %19 = arith.cmpi slt, %7, %18 : vector<8x128xi32>
    %20 = arith.andi %17, %19 : vector<8x128xi1>
    %c40_i32_9 = arith.constant 40 : i32
    %21 = vector.broadcast %c40_i32_9 : i32 to vector<8x128xi32>
    %22 = arith.cmpi sge, %7, %21 : vector<8x128xi32>
    %23 = arith.andi %17, %22 : vector<8x128xi1>
    %cst_10 = arith.constant 5.000000e-01 : f32
    %24 = vector.broadcast %cst_10 : f32 to vector<8x128xf32>
    %25 = arith.mulf %24, %6 : vector<8x128xf32>
    %26 = math.tanh %25 : vector<8x128xf32>
    %cst_11 = arith.constant 1.000000e+00 : f32
    %27 = vector.broadcast %cst_11 : f32 to vector<8x128xf32>
    %28 = arith.addf %26, %27 : vector<8x128xf32>
    %cst_12 = arith.constant 5.000000e-01 : f32
    %29 = vector.broadcast %cst_12 : f32 to vector<8x128xf32>
    %30 = arith.mulf %29, %28 : vector<8x128xf32>
    %cst_13 = arith.constant 0xFF800000 : f32
    %31 = vector.broadcast %cst_13 : f32 to vector<8x128xf32>
    %32 = arith.select %20, %6, %31 : vector<8x128xi1>, vector<8x128xf32>
    %cst_14 = arith.constant dense<0xFF800000> : vector<8xf32>
    %33 = vector.multi_reduction <maximumf>, %32, %cst_14 [1] : vector<8x128xf32> to vector<8xf32>
    %34 = vector.shape_cast %33 : vector<8xf32> to vector<8x1xf32>
    %cst_15 = arith.constant 0xFF800000 : f32
    %35 = vector.broadcast %cst_15 : f32 to vector<8x128xf32>
    %36 = arith.select %23, %6, %35 : vector<8x128xi1>, vector<8x128xf32>
    %cst_16 = arith.constant dense<0xFF800000> : vector<8xf32>
    %37 = vector.multi_reduction <maximumf>, %36, %cst_16 [1] : vector<8x128xf32> to vector<8xf32>
    %38 = vector.shape_cast %37 : vector<8xf32> to vector<8x1xf32>
    %c40_i32_17 = arith.constant 40 : i32
    %39 = vector.broadcast %c40_i32_17 : i32 to vector<8x128xi32>
    %40 = arith.cmpi slt, %7, %39 : vector<8x128xi32>
    %41 = vector.shape_cast %34 : vector<8x1xf32> to vector<8x1xf32>
    %42 = vector.broadcast %41 : vector<8x1xf32> to vector<8x128xf32>
    %43 = vector.shape_cast %38 : vector<8x1xf32> to vector<8x1xf32>
    %44 = vector.broadcast %43 : vector<8x1xf32> to vector<8x128xf32>
    %45 = arith.select %40, %42, %44 : vector<8x128xi1>, vector<8x128xf32>
    %46 = arith.subf %6, %45 : vector<8x128xf32>
    %47 = math.exp %46 : vector<8x128xf32>
    %cst_18 = arith.constant 0.000000e+00 : f32
    %48 = vector.broadcast %cst_18 : f32 to vector<8x128xf32>
    %49 = arith.select %17, %47, %48 : vector<8x128xi1>, vector<8x128xf32>
    %cst_19 = arith.constant 0.000000e+00 : f32
    %50 = vector.broadcast %cst_19 : f32 to vector<8x128xf32>
    %51 = arith.select %20, %49, %50 : vector<8x128xi1>, vector<8x128xf32>
    %cst_20 = arith.constant dense<0.000000e+00> : vector<8xf32>
    %52 = vector.multi_reduction <add>, %51, %cst_20 [1] : vector<8x128xf32> to vector<8xf32>
    %53 = vector.shape_cast %52 : vector<8xf32> to vector<8x1xf32>
    %cst_21 = arith.constant 0.000000e+00 : f32
    %54 = vector.broadcast %cst_21 : f32 to vector<8x128xf32>
    %55 = arith.select %23, %49, %54 : vector<8x128xi1>, vector<8x128xf32>
    %cst_22 = arith.constant dense<0.000000e+00> : vector<8xf32>
    %56 = vector.multi_reduction <add>, %55, %cst_22 [1] : vector<8x128xf32> to vector<8xf32>
    %57 = vector.shape_cast %56 : vector<8xf32> to vector<8x1xf32>
    %c40_i32_23 = arith.constant 40 : i32
    %58 = vector.broadcast %c40_i32_23 : i32 to vector<8x128xi32>
    %59 = arith.cmpi slt, %7, %58 : vector<8x128xi32>
    %60 = vector.shape_cast %53 : vector<8x1xf32> to vector<8x1xf32>
    %61 = vector.broadcast %60 : vector<8x1xf32> to vector<8x128xf32>
    %62 = vector.shape_cast %57 : vector<8x1xf32> to vector<8x1xf32>
    %63 = vector.broadcast %62 : vector<8x1xf32> to vector<8x128xf32>
    %64 = arith.select %59, %61, %63 : vector<8x128xi1>, vector<8x128xf32>
    %65 = arith.divf %49, %64 : vector<8x128xf32>
    %cst_24 = arith.constant 0.000000e+00 : f32
    %66 = vector.broadcast %cst_24 : f32 to vector<8x128xf32>
    %67 = arith.select %14, %30, %66 : vector<8x128xi1>, vector<8x128xf32>
    %68 = arith.select %17, %65, %67 : vector<8x128xi1>, vector<8x128xf32>
    %69 = vector.extract_strided_slice %68 {offsets = [0, 40], sizes = [8, 88], strides = [1, 1]} : vector<8x128xf32> to vector<8x88xf32>
    %70 = vector.extract_strided_slice %68 {offsets = [0, 0], sizes = [8, 40], strides = [1, 1]} : vector<8x128xf32> to vector<8x40xf32>
    %71 = tpu.concatenate %69, %70 in 1 : vector<8x88xf32>, vector<8x40xf32> -> vector<8x128xf32>
    %72 = arith.mulf %68, %71 : vector<8x128xf32>
    %c32_i32_25 = arith.constant 32 : i32
    %73 = vector.broadcast %c32_i32_25 : i32 to vector<8x128xi32>
    %74 = arith.cmpi sge, %7, %73 : vector<8x128xi32>
    %c40_i32_26 = arith.constant 40 : i32
    %75 = vector.broadcast %c40_i32_26 : i32 to vector<8x128xi32>
    %76 = arith.cmpi slt, %7, %75 : vector<8x128xi32>
    %77 = arith.andi %74, %76 : vector<8x128xi1>
    %cst_27 = arith.constant 0.000000e+00 : f32
    %78 = vector.broadcast %cst_27 : f32 to vector<8x128xf32>
    %79 = arith.select %77, %72, %78 : vector<8x128xi1>, vector<8x128xf32>
    %cst_28 = arith.constant dense<0.000000e+00> : vector<8xf32>
    %80 = vector.multi_reduction <add>, %79, %cst_28 [1] : vector<8x128xf32> to vector<8xf32>
    %81 = vector.shape_cast %80 : vector<8xf32> to vector<8x1xf32>
    %82 = vector.broadcast %81 : vector<8x1xf32> to vector<8x128xf32>
    %83 = arith.divf %72, %82 : vector<8x128xf32>
    %84 = arith.select %77, %83, %72 : vector<8x128xi1>, vector<8x128xf32>
    %85 = vector.extract_strided_slice %84 {offsets = [0, 48], sizes = [8, 80], strides = [1, 1]} : vector<8x128xf32> to vector<8x80xf32>
    %86 = vector.extract_strided_slice %84 {offsets = [0, 0], sizes = [8, 48], strides = [1, 1]} : vector<8x128xf32> to vector<8x48xf32>
    %87 = tpu.concatenate %85, %86 in 1 : vector<8x80xf32>, vector<8x48xf32> -> vector<8x128xf32>
    %c120_i32 = arith.constant 120 : i32
    %88 = vector.broadcast %c120_i32 : i32 to vector<8x128xi32>
    %89 = arith.cmpi slt, %7, %88 : vector<8x128xi32>
    %cst_29 = arith.constant 0.000000e+00 : f32
    %90 = vector.broadcast %cst_29 : f32 to vector<8x128xf32>
    %91 = arith.select %89, %87, %90 : vector<8x128xi1>, vector<8x128xf32>
    %92 = arith.select %14, %68, %91 : vector<8x128xi1>, vector<8x128xf32>
    %c0_30 = arith.constant 0 : index
    %c0_31 = arith.constant 0 : index
    %93 = vector.load %arg4[%c0_30, %c0_31] : memref<8x128xf32, #tpu.memory_space<vmem>>, vector<8x128xf32>
    tpu.vector_store %arg4[%c0_30, %c0_31], %92 {strides = array<i32>} : memref<8x128xf32, #tpu.memory_space<vmem>>, vector<8x128xf32>,
    return
  }
  func.func @transform_0(%arg0: i32) -> (i32, i32) {
    %c0_i32 = arith.constant 0 : i32
    %c0_i32_0 = arith.constant 0 : i32
    return %arg0, %c0_i32 : i32, i32
  }
  func.func @transform_1(%arg0: i32) -> (i32, i32) {
    %c0_i32 = arith.constant 0 : i32
    %c0_i32_0 = arith.constant 0 : i32
    %c0_i32_1 = arith.constant 0 : i32
    return %c0_i32, %c0_i32_0 : i32, i32
  }
  func.func @transform_2(%arg0: i32) -> (i32, i32) {
    %c0_i32 = arith.constant 0 : i32
    %c0_i32_0 = arith.constant 0 : i32
    %c0_i32_1 = arith.constant 0 : i32
    return %c0_i32, %c0_i32_0 : i32, i32
  }
  func.func @transform_3(%arg0: i32) -> (i32, i32) {
    %c0_i32 = arith.constant 0 : i32
    %c0_i32_0 = arith.constant 0 : i32
    return %arg0, %c0_i32 : i32, i32
  }
}

</mosaic_0001>

<llo_original>
// kernel: tpu_custom_call.1
$region0: #{tpu_custom_call.1}
  #allocation0 [shape = 'u32[]', space=smem, size = 0x4, offset = 0x4, fixed_abs, tag = 'smem constant byte address 0x4 - core index']
  #allocation1 [shape = 'u32[144,128]{1,0:T(1,128)}', space=vmem, size = 0x12000, scoped, tag = 'internal scratch']
  %s0 = inlined_call_operand.hbm [shape: f32[8,128], index: 0, kind: input, shape index: {}]
  %s1 = inlined_call_operand.hbm [shape: f32[128,256], index: 1, kind: input, shape index: {}]
  %s2 = inlined_call_operand.hbm [shape: f32[256,128], index: 2, kind: input, shape index: {}]
  %s3 = inlined_call_operand.hbm [shape: f32[8,128], index: 3, kind: output, shape index: {}]
  %s4 = sld [smem:[#allocation0]]
  $region34: #{tpu_custom_call.1} parent=0
    _
  %s6 = ssub.s32 1, %s4
  %s7 = scalar_select 0, %s6, %s4
  $region1: #{tpu_custom_call.1} parent=0
    #allocation2 [shape = 'u8[4096]{0}', space=vmem, size = 0x1000, scoped, tag = 'input window, operand 0, single buffered']
    #allocation3 [shape = 's32[1]{0}', space=sflag, size = 0x4, scoped, tag = 'scoped memory for tpu_custom_call.1']
    #allocation4 [shape = 's32[1]{0}', space=sflag, size = 0x4, scoped, tag = 'scoped memory for tpu_custom_call.1']
    #allocation5 [shape = 'u8[131072]{0}', space=vmem, size = 0x20000, scoped, tag = 'input window, operand 1, single buffered']
    #allocation6 [shape = 's32[1]{0}', space=sflag, size = 0x4, scoped, tag = 'scoped memory for tpu_custom_call.1']
    #allocation7 [shape = 'u8[131072]{0}', space=vmem, size = 0x20000, scoped, tag = 'input window, operand 2, single buffered']
    #allocation8 [shape = 'u8[4096]{0}', space=vmem, size = 0x1000, scoped, tag = 'output window, operand 0, single buffered']
    %8 = vsyncpa [#allocation3], 0
    %9 = vsyncpa [#allocation6], 0
    %10 = vsyncpa [#allocation4], 0
    // Predicated region
    $region2: #{tpu_custom_call.1} parent=1 // pred_check
      _
    $region3: #{tpu_custom_call.1} parent=1 // pred_check_branch
      %12 = sbr.rel (0) target = $region5
    $region4: #{tpu_custom_call.1} parent=1 // pred_region
      %s14 = ssub.s32 128, 128
      %15 = vsyncadd [#allocation3], %s14
      %s17 = sshll.u32 [#allocation2], 4
      %s18 = int_to_ptr.vmem [resolvable:$true] %s17
      %20 = dma.hbm_to_vmem [thread:$0]  %s0, 128, %s18, [#allocation3]
    $region5: #{tpu_custom_call.1} parent=1 // pred_fallthru
      _
    // Predicated region
    $region6: #{tpu_custom_call.1} parent=1 // pred_check
      _
    $region7: #{tpu_custom_call.1} parent=1 // pred_check_branch
      %22 = sbr.rel (0) target = $region9
    $region8: #{tpu_custom_call.1} parent=1 // pred_region
      %s24 = ssub.s32 4096, 4096
      %25 = vsyncadd [#allocation6], %s24
      %s26 = sshll.u32 [#allocation5], 4
      %s27 = int_to_ptr.vmem [resolvable:$true] %s26
      %32 = dma.hbm_to_vmem [thread:$0]  %s1, 4096, %s27, [#allocation6], 256, 256, 16
    $region9: #{tpu_custom_call.1} parent=1 // pred_fallthru
      _
    // Predicated region
    $region10: #{tpu_custom_call.1} parent=1 // pred_check
      _
    $region11: #{tpu_custom_call.1} parent=1 // pred_check_branch
      %34 = sbr.rel (0) target = $region13
    $region12: #{tpu_custom_call.1} parent=1 // pred_region
      %s36 = ssub.s32 4096, 4096
      %37 = vsyncadd [#allocation6], %s36
      %s38 = sshll.u32 [#allocation7], 4
      %s39 = int_to_ptr.vmem [resolvable:$true] %s38
      %44 = dma.hbm_to_vmem [thread:$0]  %s2, 4096, %s39, [#allocation6], 128, 128, 8
    $region13: #{tpu_custom_call.1} parent=1 // pred_fallthru
      _
    // Predicated region
    $region14: #{tpu_custom_call.1} parent=1 // pred_check
      _
    $region15: #{tpu_custom_call.1} parent=1 // pred_check_branch
      %46 = sbr.rel (0) target = $region17
    $region16: #{tpu_custom_call.1} parent=1 // pred_region
      %47 = dma.done [#allocation3], 128
    $region17: #{tpu_custom_call.1} parent=1 // pred_fallthru
      _
    // Predicated region
    $region18: #{tpu_custom_call.1} parent=1 // pred_check
      _
    $region19: #{tpu_custom_call.1} parent=1 // pred_check_branch
      %49 = sbr.rel (0) target = $region21
    $region20: #{tpu_custom_call.1} parent=1 // pred_region
      %50 = dma.done [#allocation6], 4096
    $region21: #{tpu_custom_call.1} parent=1 // pred_fallthru
      _
    // Predicated region
    $region22: #{tpu_custom_call.1} parent=1 // pred_check
      _
    $region23: #{tpu_custom_call.1} parent=1 // pred_check_branch
      %52 = sbr.rel (0) target = $region25
    $region24: #{tpu_custom_call.1} parent=1 // pred_region
      %53 = dma.done [#allocation6], 4096
    $region25: #{tpu_custom_call.1} parent=1 // pred_fallthru
      _
    %v54 = vld [vmem:[#allocation2] sm:$0xff]
    %v55 = vld [vmem:[#allocation5] sm:$0xff]
    %v56 = vld [vmem:[#allocation5 + $0x8] sm:$0xff]
    %v57 = vld [vmem:[#allocation5 + $0x10] sm:$0xff]
    %v58 = vld [vmem:[#allocation5 + $0x18] sm:$0xff]
    %v59 = vld [vmem:[#allocation5 + $0x20] sm:$0xff]
    %v60 = vld [vmem:[#allocation5 + $0x28] sm:$0xff]
    %v61 = vld [vmem:[#allocation5 + $0x30] sm:$0xff]
    %v62 = vld [vmem:[#allocation5 + $0x38] sm:$0xff]
    %v63 = vld [vmem:[#allocation5 + $0x40] sm:$0xff]
    %v64 = vld [vmem:[#allocation5 + $0x48] sm:$0xff]
    %v65 = vld [vmem:[#allocation5 + $0x50] sm:$0xff]
    %v66 = vld [vmem:[#allocation5 + $0x58] sm:$0xff]
    %v67 = vld [vmem:[#allocation5 + $0x60] sm:$0xff]
    %v68 = vld [vmem:[#allocation5 + $0x68] sm:$0xff]
    %v69 = vld [vmem:[#allocation5 + $0x70] sm:$0xff]
    %v70 = vld [vmem:[#allocation5 + $0x78] sm:$0xff]
    %v71 = vld [vmem:[#allocation5 + $0x80] sm:$0xff]
    %v72 = vld [vmem:[#allocation5 + $0x88] sm:$0xff]
    %v73 = vld [vmem:[#allocation5 + $0x90] sm:$0xff]
    %v74 = vld [vmem:[#allocation5 + $0x98] sm:$0xff]
    %v75 = vld [vmem:[#allocation5 + $0xa0] sm:$0xff]
    %v76 = vld [vmem:[#allocation5 + $0xa8] sm:$0xff]
    %v77 = vld [vmem:[#allocation5 + $0xb0] sm:$0xff]
    %v78 = vld [vmem:[#allocation5 + $0xb8] sm:$0xff]
    %v79 = vld [vmem:[#allocation5 + $0xc0] sm:$0xff]
    %v80 = vld [vmem:[#allocation5 + $0xc8] sm:$0xff]
    %v81 = vld [vmem:[#allocation5 + $0xd0] sm:$0xff]
    %v82 = vld [vmem:[#allocation5 + $0xd8] sm:$0xff]
    %v83 = vld [vmem:[#allocation5 + $0xe0] sm:$0xff]
    %v84 = vld [vmem:[#allocation5 + $0xe8] sm:$0xff]
    %v85 = vld [vmem:[#allocation5 + $0xf0] sm:$0xff]
    %v86 = vld [vmem:[#allocation5 + $0xf8] sm:$0xff]
    %87 = vmatprep.subr.mxu0 %v56
    %88 = vmatpush1.msra.mxu0 %v55
    %89 = vmatprep.subr.mxu0 %v58
    %90 = vmatpush1.msra.mxu0 %v57
    %91 = vmatprep.subr.mxu0 %v60
    %92 = vmatpush1.msra.mxu0 %v59
    %93 = vmatprep.subr.mxu0 %v62
    %94 = vmatpush1.msra.mxu0 %v61
    %95 = vmatprep.subr.mxu0 %v64
    %96 = vmatpush1.msra.mxu0 %v63
    %97 = vmatprep.subr.mxu0 %v66
    %98 = vmatpush1.msra.mxu0 %v65
    %99 = vmatprep.subr.mxu0 %v68
    %100 = vmatpush1.msra.mxu0 %v67
    %101 = vmatprep.subr.mxu0 %v70
    %102 = vmatpush1.msra.mxu0 %v69
    %103 = vmatprep.subr.mxu0 %v72
    %104 = vmatpush1.msra.mxu0 %v71
    %105 = vmatprep.subr.mxu0 %v74
    %106 = vmatpush1.msra.mxu0 %v73
    %107 = vmatprep.subr.mxu0 %v76
    %108 = vmatpush1.msra.mxu0 %v75
    %109 = vmatprep.subr.mxu0 %v78
    %110 = vmatpush1.msra.mxu0 %v77
    %111 = vmatprep.subr.mxu0 %v80
    %112 = vmatpush1.msra.mxu0 %v79
    %113 = vmatprep.subr.mxu0 %v82
    %114 = vmatpush1.msra.mxu0 %v81
    %115 = vmatprep.subr.mxu0 %v84
    %116 = vmatpush1.msra.mxu0 %v83
    %117 = vmatprep.subr.mxu0 %v86
    %118 = vmatpush1.msra.mxu0 %v85
    %119 = vmatprep.subr.mxu0 0.0
    %120 = vmatpush1.msra.mxu0 0.0
    %121 = vmatprep.subr.mxu0 0.0
    %122 = vmatpush1.msra.mxu0 0.0
    %123 = vmatprep.subr.mxu0 0.0
    %124 = vmatpush1.msra.mxu0 0.0
    %125 = vmatprep.subr.mxu0 0.0
    %126 = vmatpush1.msra.mxu0 0.0
    %127 = vmatprep.subr.mxu0 0.0
    %128 = vmatpush1.msra.mxu0 0.0
    %129 = vmatprep.subr.mxu0 0.0
    %130 = vmatpush1.msra.mxu0 0.0
    %131 = vmatprep.subr.mxu0 0.0
    %132 = vmatpush1.msra.mxu0 0.0
    %133 = vmatprep.subr.mxu0 0.0
    %134 = vmatpush1.msra.mxu0 0.0
    %135 = vmatprep.subr.mxu0 0.0
    %136 = vmatpush1.msra.mxu0 0.0
    %137 = vmatprep.subr.mxu0 0.0
    %138 = vmatpush1.msra.mxu0 0.0
    %139 = vmatprep.subr.mxu0 0.0
    %140 = vmatpush1.msra.mxu0 0.0
    %141 = vmatprep.subr.mxu0 0.0
    %142 = vmatpush1.msra.mxu0 0.0
    %143 = vmatprep.subr.mxu0 0.0
    %144 = vmatpush1.msra.mxu0 0.0
    %145 = vmatprep.subr.mxu0 0.0
    %146 = vmatpush1.msra.mxu0 0.0
    %147 = vmatprep.subr.mxu0 0.0
    %148 = vmatpush1.msra.mxu0 0.0
    %149 = vmatprep.subr.mxu0 0.0
    %150 = vmatpush1.msra.mxu0 0.0
    %151 = vmatprep.mubr.f32.mxu0 0.0
    %152 = vmatmul.mubr.f32.gmra.mrb[0].mxu0 %v54
    %v153 = vpop.f32.mrb[0].mxu0
    %v154 = vadd.f32 0.0, %v153
    %v155 = vpop.f32.mrb[0].mxu0
    %v156 = vadd.f32 0.0, %v155
    %157 = vdwg.mxu0
    %v158 = vmax.f32 %v154, 0.0
    %v159 = vmax.f32 %v156, 0.0
    %v160 = vld [vmem:[#allocation7] sm:$0xff]
    %v161 = vld [vmem:[#allocation7 + $0x8] sm:$0xff]
    %v162 = vld [vmem:[#allocation7 + $0x10] sm:$0xff]
    %v163 = vld [vmem:[#allocation7 + $0x18] sm:$0xff]
    %v164 = vld [vmem:[#allocation7 + $0x20] sm:$0xff]
    %v165 = vld [vmem:[#allocation7 + $0x28] sm:$0xff]
    %v166 = vld [vmem:[#allocation7 + $0x30] sm:$0xff]
    %v167 = vld [vmem:[#allocation7 + $0x38] sm:$0xff]
    %v168 = vld [vmem:[#allocation7 + $0x40] sm:$0xff]
    %v169 = vld [vmem:[#allocation7 + $0x48] sm:$0xff]
    %v170 = vld [vmem:[#allocation7 + $0x50] sm:$0xff]
    %v171 = vld [vmem:[#allocation7 + $0x58] sm:$0xff]
    %v172 = vld [vmem:[#allocation7 + $0x60] sm:$0xff]
    %v173 = vld [vmem:[#allocation7 + $0x68] sm:$0xff]
    %v174 = vld [vmem:[#allocation7 + $0x70] sm:$0xff]
    %v175 = vld [vmem:[#allocation7 + $0x78] sm:$0xff]
    %v176 = vld [vmem:[#allocation7 + $0x80] sm:$0xff]
    %v177 = vld [vmem:[#allocation7 + $0x88] sm:$0xff]
    %v178 = vld [vmem:[#allocation7 + $0x90] sm:$0xff]
    %v179 = vld [vmem:[#allocation7 + $0x98] sm:$0xff]
    %v180 = vld [vmem:[#allocation7 + $0xa0] sm:$0xff]
    %v181 = vld [vmem:[#allocation7 + $0xa8] sm:$0xff]
    %v182 = vld [vmem:[#allocation7 + $0xb0] sm:$0xff]
    %v183 = vld [vmem:[#allocation7 + $0xb8] sm:$0xff]
    %v184 = vld [vmem:[#allocation7 + $0xc0] sm:$0xff]
    %v185 = vld [vmem:[#allocation7 + $0xc8] sm:$0xff]
    %v186 = vld [vmem:[#allocation7 + $0xd0] sm:$0xff]
    %v187 = vld [vmem:[#allocation7 + $0xd8] sm:$0xff]
    %v188 = vld [vmem:[#allocation7 + $0xe0] sm:$0xff]
    %v189 = vld [vmem:[#allocation7 + $0xe8] sm:$0xff]
    %v190 = vld [vmem:[#allocation7 + $0xf0] sm:$0xff]
    %v191 = vld [vmem:[#allocation7 + $0xf8] sm:$0xff]
    %192 = vmatprep.subr.mxu0 0.0
    %193 = vmatpush1.msra.mxu0 %v160
    %194 = vmatprep.subr.mxu0 0.0
    %195 = vmatpush1.msra.mxu0 %v161
    %196 = vmatprep.subr.mxu0 0.0
    %197 = vmatpush1.msra.mxu0 %v162
    %198 = vmatprep.subr.mxu0 0.0
    %199 = vmatpush1.msra.mxu0 %v163
    %200 = vmatprep.subr.mxu0 0.0
    %201 = vmatpush1.msra.mxu0 %v164
    %202 = vmatprep.subr.mxu0 0.0
    %203 = vmatpush1.msra.mxu0 %v165
    %204 = vmatprep.subr.mxu0 0.0
    %205 = vmatpush1.msra.mxu0 %v166
    %206 = vmatprep.subr.mxu0 0.0
    %207 = vmatpush1.msra.mxu0 %v167
    %208 = vmatprep.subr.mxu0 0.0
    %209 = vmatpush1.msra.mxu0 %v168
    %210 = vmatprep.subr.mxu0 0.0
    %211 = vmatpush1.msra.mxu0 %v169
    %212 = vmatprep.subr.mxu0 0.0
    %213 = vmatpush1.msra.mxu0 %v170
    %214 = vmatprep.subr.mxu0 0.0
    %215 = vmatpush1.msra.mxu0 %v171
    %216 = vmatprep.subr.mxu0 0.0
    %217 = vmatpush1.msra.mxu0 %v172
    %218 = vmatprep.subr.mxu0 0.0
    %219 = vmatpush1.msra.mxu0 %v173
    %220 = vmatprep.subr.mxu0 0.0
    %221 = vmatpush1.msra.mxu0 %v174
    %222 = vmatprep.subr.mxu0 0.0
    %223 = vmatpush1.msra.mxu0 %v175
    %224 = vmatprep.subr.mxu0 0.0
    %225 = vmatpush1.msra.mxu0 %v176
    %226 = vmatprep.subr.mxu0 0.0
    %227 = vmatpush1.msra.mxu0 %v177
    %228 = vmatprep.subr.mxu0 0.0
    %229 = vmatpush1.msra.mxu0 %v178
    %230 = vmatprep.subr.mxu0 0.0
    %231 = vmatpush1.msra.mxu0 %v179
    %232 = vmatprep.subr.mxu0 0.0
    %233 = vmatpush1.msra.mxu0 %v180
    %234 = vmatprep.subr.mxu0 0.0
    %235 = vmatpush1.msra.mxu0 %v181
    %236 = vmatprep.subr.mxu0 0.0
    %237 = vmatpush1.msra.mxu0 %v182
    %238 = vmatprep.subr.mxu0 0.0
    %239 = vmatpush1.msra.mxu0 %v183
    %240 = vmatprep.subr.mxu0 0.0
    %241 = vmatpush1.msra.mxu0 %v184
    %242 = vmatprep.subr.mxu0 0.0
    %243 = vmatpush1.msra.mxu0 %v185
    %244 = vmatprep.subr.mxu0 0.0
    %245 = vmatpush1.msra.mxu0 %v186
    %246 = vmatprep.subr.mxu0 0.0
    %247 = vmatpush1.msra.mxu0 %v187
    %248 = vmatprep.subr.mxu0 0.0
    %249 = vmatpush1.msra.mxu0 %v188
    %250 = vmatprep.subr.mxu0 0.0
    %251 = vmatpush1.msra.mxu0 %v189
    %252 = vmatprep.subr.mxu0 0.0
    %253 = vmatpush1.msra.mxu0 %v190
    %254 = vmatprep.subr.mxu0 0.0
    %255 = vmatpush1.msra.mxu0 %v191
    %256 = vmatprep.mubr.f32.mxu0 %v159
    %257 = vmatmul.mubr.f32.gmra.mrb[0].mxu0 %v158
    %v258 = vpop.f32.mrb[0].mxu0
    %v259 = vadd.f32 0.0, %v258
    %v260 = vpop.f32.mrb[0].mxu0
    %261 = vdwg.mxu0
    %v262 = vlaneseq
    %v263 = vand.u32 %v262, 127
    %vm264 = vcmp.lt.s32.totalorder %v263, 40
    %v265 = vsub.s32 %v263, 40
    %v266 = vsel %vm264, %v263, %v265
    %vm267 = vcmp.lt.s32.totalorder %v263, 80
    %vm268 = vcmp.ge.s32.totalorder %v266, 32
    %vm269 = vmand %vm267, %vm268
    %vm270 = vmand %vm269, %vm264
    %vm271 = vcmp.ge.s32.totalorder %v263, 40
    %vm272 = vmand %vm269, %vm271
    %v273 = vmul.f32 %v259, 0.5
    %v274 = vtanh.pop %v273
    %v275 = vadd.f32 %v274, 1.0
    %v276 = vmul.f32 %v275, 0.5
    %v277 = vsel %vm270, %v259, -inf
    %278 = vmax.xlane.f32.xlu0 %v277
    %v279 = vpop.xlane.xlu0 %278
    %v280 = vsel %vm272, %v259, -inf
    %281 = vmax.xlane.f32.xlu0 %v280
    %v282 = vpop.xlane.xlu0 %281
    %v283 = vsel %vm264, %v279, %v282
    %v284 = vsub.f32 %v259, %v283
    %v285 = vmul.f32 %v284, 1.442695
    %v286 = vpow.pop %v285
    %v287 = vsel %vm269, %v286, 0.0
    %v288 = vsel %vm270, %v287, 0.0
    %289 = vadd.xlane.f32.xlu0 %v288
    %v290 = vpop.xlane.xlu0 %289
    %v291 = vsel %vm272, %v287, 0.0
    %292 = vadd.xlane.f32.xlu0 %v291
    %v293 = vpop.xlane.xlu0 %292
    %v294 = vsel %vm264, %v290, %v293
    %v295 = vrcp.pop %v294
    %v296 = vmul.f32 %v287, %v295
    %v297 = vsel %vm267, %v276, 0.0
    %v298 = vsel %vm269, %v296, %v297
    %300 = vrot.lane.b32.xlu0 %v298, 88
    %v301 = vpop.permute.xlu0 %300
    %v303 = vmul.f32 %v298, %v301
    %vm304 = vcmp.ge.s32.totalorder %v263, 32
    %vm305 = vmand %vm304, %vm264
    %v306 = vsel %vm305, %v303, 0.0
    %307 = vadd.xlane.f32.xlu0 %v306
    %v308 = vpop.xlane.xlu0 %307
    %v309 = vrcp.pop %v308
    %v310 = vmul.f32 %v303, %v309
    %v311 = vsel %vm305, %v310, %v303
    %313 = vrot.lane.b32.xlu0 %v311, 80
    %v314 = vpop.permute.xlu0 %313
    %vm316 = vcmp.lt.s32.totalorder %v263, 120
    %v317 = vsel %vm316, %v314, 0.0
    %v318 = vsel %vm267, %v298, %v317
    %319 = vst [vmem:[#allocation8] sm:$0xff] %v318
    // Predicated region
    $region26: #{tpu_custom_call.1} parent=1 // pred_check
      _
    $region27: #{tpu_custom_call.1} parent=1 // pred_check_branch
      %321 = sbr.rel (0) target = $region29
    $region28: #{tpu_custom_call.1} parent=1 // pred_region
      %s323 = ssub.s32 128, 128
      %324 = vsyncadd [#allocation4], %s323
      %s326 = sshll.u32 [#allocation8], 4
      %s327 = int_to_ptr.vmem [resolvable:$true] %s326
      %329 = dma.vmem_to_hbm [thread:$0]  %s327, 128, %s3, [#allocation4]
    $region29: #{tpu_custom_call.1} parent=1 // pred_fallthru
      _
    // Predicated region
    $region30: #{tpu_custom_call.1} parent=1 // pred_check
      _
    $region31: #{tpu_custom_call.1} parent=1 // pred_check_branch
      %331 = sbr.rel (0) target = $region33
    $region32: #{tpu_custom_call.1} parent=1 // pred_region
      %332 = dma.done [#allocation4], 128
    $region33: #{tpu_custom_call.1} parent=1 // pred_fallthru
      _
    %333 = vsyncpa [#allocation3], 1
    %334 = vsyncpa [#allocation6], 1
    %335 = vsyncpa [#allocation4], 1

</llo_original>
